<compile_context>
chip_gen: v5e
topology: v5e:2x2
jax: 0.10.0
libtpu: 0.0.40
codegen_flags: <defaults>
</compile_context>

<pallas_src>
import jax
import jax.numpy as jnp
from jax.experimental import pallas as pl
from jax.experimental.pallas import tpu as pltpu

LANES = 128            # vreg lane width
SUBLANES = 8           # vreg sublane count (f32)
MAX_BLOCK_ELEMS = 1 << 20   # cap f32 temporaries per block at 4 MiB


def _chip_config():
    """Return (target bytes per input block, TensorCores to use per chip)."""
    try:
        kind = jax.devices()[0].device_kind.lower()
    except Exception:  # pragma: no cover - conservative fallback
        return 2 << 20, 1
    if "v5e" in kind or "v5 lite" in kind or "v5lite" in kind:
        return 1 << 20, 1          # ~820 GB/s, 16 MiB scoped VMEM default, 1 TC
    if "v6" in kind:
        return 2 << 20, 1          # ~1.4 TB/s, 1 TC
    if "v7" in kind or "tpu7" in kind or "7x" in kind:
        return 4 << 20, 2          # ~3.2 TB/s, 2 TCs/chip
    if "v4" in kind or "v5" in kind:
        return 2 << 20, 2          # v4 / v5p megacore
    return 2 << 20, 1


def _sq_sum_f32(a, b):
    d = a.astype(jnp.float32) - b.astype(jnp.float32)
    return jnp.sum(d * d, dtype=jnp.float32)


def _make_mse_kernel(tile_rows, lane_dim, used_cores, full_blocks, over_partition):
    groups = tile_rows // SUBLANES
    lgroups = lane_dim // LANES

    def kernel(r_ref, x_ref, o_ref):
        i = pl.program_id(1)  # reduction ("arbitrary") axis

        @pl.when(i == 0)
        def _init():
            o_ref[...] = jnp.zeros_like(o_ref)

        def _accumulate():
            d = r_ref[...].astype(jnp.float32) - x_ref[...].astype(jnp.float32)
            sq = d * d
            # Fold lane tiles with static 128-aligned slices (vreg-to-vreg adds).
            lane = sq[:, 0:LANES]
            for l in range(1, lgroups):
                lane = lane + sq[:, l * LANES:(l + 1) * LANES]
            # Fold sublane groups of 8 rows into the resident (8,128) accumulator.
            o_ref[...] += lane.reshape(groups, SUBLANES, LANES).sum(axis=0)

        if over_partition:
            # Only present when used_cores does not divide full_blocks: the one
            # duplicated (clamped-index) step is skipped entirely.
            c = pl.program_id(0)
            blk = i * used_cores + c

            @pl.when(blk < full_blocks)
            def _valid():
                _accumulate()
        else:
            _accumulate()

    return kernel


def mse_loss(recon, x):
    """mean((recon - x)**2) over all elements == nn.MSELoss()(recon, x)."""
    assert recon.shape == x.shape, "MSELoss requires matching shapes"
    n = int(recon.size)  # static under jit
    assert n > 0, "MSELoss over zero elements is undefined"

    itemsize = jnp.dtype(recon.dtype).itemsize
    sub = max(SUBLANES, 32 // itemsize)  # 8 for f32, 16 for bf16, 32 for int8
    block_bytes, ncores = _chip_config()

    tail_sum = jnp.float32(0.0)

    last = recon.shape[-1] if recon.ndim else 1
    use_native_lanes = recon.ndim >= 2 and last % LANES == 0 and last <= 8192
    if use_native_lanes:
        # Layout-friendly: only leading dims are collapsed (no relayout copy).
        lane_dim = last
        rows = n // lane_dim
        r2 = recon.reshape(rows, lane_dim)
        t2 = x.reshape(rows, lane_dim)
    else:
        lane_dim = LANES
        rows = n // LANES
        flat_r = recon.reshape(-1)
        flat_t = x.reshape(-1)
        rem = n - rows * LANES
        if rem:
            # Sub-128 remainder handled in plain XLA (no full-array jnp.pad pass).
            tail_sum = tail_sum + _sq_sum_f32(flat_r[rows * LANES:],
                                              flat_t[rows * LANES:])
        if rows == 0:
            # Tiny input (< 128 elems): no lane-dense block possible.
            return (tail_sum / jnp.float32(n)).astype(jnp.float32)
        r2 = flat_r[: rows * LANES].reshape(rows, LANES)
        t2 = flat_t[: rows * LANES].reshape(rows, LANES)

    # Block rows: sized by BYTES (constant per-step DMA time across dtypes),
    # capped by element count (bounds f32 temp footprint) and by `rows`;
    # rounded to the packed-sublane granularity of the input dtype.
    tile_rows = min(block_bytes // (lane_dim * itemsize),
                    MAX_BLOCK_ELEMS // lane_dim,
                    rows)
    tile_rows = (tile_rows // sub) * sub
    if tile_rows == 0:
        # Fewer than `sub` rows: not worth a kernel launch.
        return ((tail_sum + _sq_sum_f32(r2, t2)) / jnp.float32(n)).astype(jnp.float32)

    full_blocks = rows // tile_rows
    covered = full_blocks * tile_rows
    if covered < rows:
        # Ragged row tail (< tile_rows rows): one small XLA pass; keeps the
        # kernel hot path mask-free.  The full arrays still go to the kernel,
        # whose grid simply never touches these rows.
        tail_sum = tail_sum + _sq_sum_f32(r2[covered:], t2[covered:])

    used = min(ncores, full_blocks)
    steps = -(-full_blocks // used)
    over_partition = used * steps > full_blocks

    if over_partition:
        # Clamp the (skipped) extra step of one core onto a valid block.
        in_idx = lambda c, i: (jnp.minimum(i * used + c, full_blocks - 1), 0)
    else:
        # Interleave blocks across cores to balance HBM traffic.
        in_idx = lambda c, i: (i * used + c, 0)

    kernel = _make_mse_kernel(tile_rows, lane_dim, used, full_blocks, over_partition)

    blk_in_bytes = tile_rows * lane_dim * itemsize
    # 2 inputs x 2 pipeline buffers + worst-case f32 temporaries + headroom.
    vmem_limit = min(4 * blk_in_bytes + 2 * tile_rows * lane_dim * 4 + (4 << 20),
                     48 << 20)

    partials = pl.pallas_call(
        kernel,
        out_shape=jax.ShapeDtypeStruct((used * SUBLANES, LANES), jnp.float32),
        grid_spec=pltpu.PrefetchScalarGridSpec(
            num_scalar_prefetch=0,
            grid=(used, steps),
            in_specs=[
                pl.BlockSpec((tile_rows, lane_dim), in_idx),
                pl.BlockSpec((tile_rows, lane_dim), in_idx),
            ],
            out_specs=pl.BlockSpec((SUBLANES, LANES), lambda c, i: (c, 0)),
        ),
        compiler_params=pltpu.CompilerParams(
            dimension_semantics=("parallel", "arbitrary"),
            vmem_limit_bytes=int(vmem_limit),
        ),
        cost_estimate=pl.CostEstimate(
            flops=3 * covered * lane_dim,
            transcendentals=0,
            bytes_accessed=2 * covered * lane_dim * itemsize
            + used * SUBLANES * LANES * 4,
        ),
    )(r2, t2)

    total = jnp.sum(partials, dtype=jnp.float32) + tail_sum
    return (total / jnp.float32(n)).astype(jnp.float32)


if __name__ == "__main__":
    key = jax.random.PRNGKey(0)
    k1, k2, k3, k4, k5, k6, k7, k8 = jax.random.split(key, 8)

    # Primary: small NCHW recon/x pair, as the module's forward implies.
    recon = jax.random.normal(k1, (2, 4, 16, 16), dtype=jnp.float32)
    x = jax.random.normal(k2, (2, 4, 16, 16), dtype=jnp.float32)
    loss = mse_loss(recon, x)
    jax.block_until_ready(loss)
    ref = jnp.mean((recon - x) ** 2)
    assert jnp.allclose(loss, ref, rtol=1e-5, atol=1e-6), (loss, ref)

    # Lane-native path (last dim % 128 == 0): multi-block + ragged row tail,
    # exercises multi-core interleave / over-partition gate on 2-TC chips.
    r2_ = jax.random.normal(k3, (10000, 256), dtype=jnp.float32)
    x2_ = jax.random.normal(k4, (10000, 256), dtype=jnp.float32)
    loss2 = mse_loss(r2_, x2_)
    jax.block_until_ready(loss2)
    ref2 = jnp.mean((r2_ - x2_) ** 2)
    assert jnp.allclose(loss2, ref2, rtol=1e-4, atol=1e-6), (loss2, ref2)

    # Ragged numel (not a multiple of 128): flatten path + XLA tails.
    r3_ = jax.random.normal(k5, (1000, 37), dtype=jnp.float32)
    x3_ = jax.random.normal(k6, (1000, 37), dtype=jnp.float32)
    loss3 = mse_loss(r3_, x3_)
    jax.block_until_ready(loss3)
    ref3 = jnp.mean((r3_ - x3_) ** 2)
    assert jnp.allclose(loss3, ref3, rtol=1e-4, atol=1e-6), (loss3, ref3)

    # bf16 inputs: byte-sized blocks, 16-row sublane packing, f32 accumulation.
    r4_ = jax.random.normal(k7, (512, 256), dtype=jnp.bfloat16)
    x4_ = jax.random.normal(k8, (512, 256), dtype=jnp.bfloat16)
    loss4 = mse_loss(r4_, x4_)
    jax.block_until_ready(loss4)
    ref4 = jnp.mean((r4_.astype(jnp.float32) - x4_.astype(jnp.float32)) ** 2)
    assert jnp.allclose(loss4, ref4, rtol=1e-3, atol=1e-6), (loss4, ref4)

    print("KERNEL_OK")
</pallas_src>

<mosaic_0001>
module attributes {stable_mosaic.version = 11 : i64} {
  func.func @kernel(%arg0: i32, %arg1: i32, %arg2: memref<16x128xf32, #tpu.memory_space<vmem>>, %arg3: memref<16x128xf32, #tpu.memory_space<vmem>>, %arg4: memref<8x128xf32, #tpu.memory_space<vmem>>) attributes {dimension_semantics = [#tpu.dimension_semantics<parallel>, #tpu.dimension_semantics<arbitrary>], iteration_bounds = array<i64: 1, 1>, scalar_prefetch = 0 : i64, scratch_operands = 0 : i64, tpu.core_type = #tpu.core_type<tc>, window_params = [{transform_indices = @transform_0, window_bounds = array<i64: 16, 128>}, {transform_indices = @transform_1, window_bounds = array<i64: 16, 128>}, {transform_indices = @transform_2, window_bounds = array<i64: 8, 128>}]} {
    %c0_i32 = arith.constant 0 : i32
    %0 = arith.cmpi eq, %arg1, %c0_i32 : i32
    %1 = arith.extui %0 : i1 to i32
    %c0_i32_0 = arith.constant 0 : i32
    %2 = arith.cmpi ne, %1, %c0_i32_0 : i32
    scf.if %2 {
      %cst_8 = arith.constant 0.000000e+00 : f32
      %12 = vector.broadcast %cst_8 : f32 to vector<8x128xf32>
      %c0_9 = arith.constant 0 : index
      %c0_10 = arith.constant 0 : index
      %13 = vector.load %arg4[%c0_9, %c0_10] : memref<8x128xf32, #tpu.memory_space<vmem>>, vector<8x128xf32>
      tpu.vector_store %arg4[%c0_9, %c0_10], %12 {strides = array<i32>} : memref<8x128xf32, #tpu.memory_space<vmem>>, vector<8x128xf32>,
    } else {
    }
    %c0 = arith.constant 0 : index
    %c0_1 = arith.constant 0 : index
    %3 = vector.load %arg2[%c0, %c0_1] : memref<16x128xf32, #tpu.memory_space<vmem>>, vector<16x128xf32>
    %c0_2 = arith.constant 0 : index
    %c0_3 = arith.constant 0 : index
    %4 = vector.load %arg3[%c0_2, %c0_3] : memref<16x128xf32, #tpu.memory_space<vmem>>, vector<16x128xf32>
    %5 = arith.subf %3, %4 : vector<16x128xf32>
    %6 = arith.mulf %5, %5 : vector<16x128xf32>
    %c0_4 = arith.constant 0 : index
    %c0_5 = arith.constant 0 : index
    %7 = vector.load %arg4[%c0_4, %c0_5] : memref<8x128xf32, #tpu.memory_space<vmem>>, vector<8x128xf32>
    %8 = vector.shape_cast %6 : vector<16x128xf32> to vector<2x8x128xf32>
    %cst = arith.constant dense<0.000000e+00> : vector<8x128xf32>
    %9 = vector.multi_reduction <add>, %8, %cst [0] : vector<2x8x128xf32> to vector<8x128xf32>
    %10 = arith.addf %7, %9 : vector<8x128xf32>
    %c0_6 = arith.constant 0 : index
    %c0_7 = arith.constant 0 : index
    %11 = vector.load %arg4[%c0_6, %c0_7] : memref<8x128xf32, #tpu.memory_space<vmem>>, vector<8x128xf32>
    tpu.vector_store %arg4[%c0_6, %c0_7], %10 {strides = array<i32>} : memref<8x128xf32, #tpu.memory_space<vmem>>, vector<8x128xf32>,
    return
  }
  func.func @transform_0(%arg0: i32, %arg1: i32) -> (i32, i32) {
    %c1_i32 = arith.constant 1 : i32
    %0 = arith.muli %arg1, %c1_i32 : i32
    %1 = arith.addi %0, %arg0 : i32
    %c0_i32 = arith.constant 0 : i32
    %c0_i32_0 = arith.constant 0 : i32
    return %1, %c0_i32 : i32, i32
  }
  func.func @transform_1(%arg0: i32, %arg1: i32) -> (i32, i32) {
    %c1_i32 = arith.constant 1 : i32
    %0 = arith.muli %arg1, %c1_i32 : i32
    %1 = arith.addi %0, %arg0 : i32
    %c0_i32 = arith.constant 0 : i32
    %c0_i32_0 = arith.constant 0 : i32
    return %1, %c0_i32 : i32, i32
  }
  func.func @transform_2(%arg0: i32, %arg1: i32) -> (i32, i32) {
    %c0_i32 = arith.constant 0 : i32
    %c0_i32_0 = arith.constant 0 : i32
    return %arg0, %c0_i32 : i32, i32
  }
}

</mosaic_0001>

<llo_original>
// kernel: tpu_custom_call.1
$region0: #{tpu_custom_call.1}
  #allocation0 [shape = 'u32[]', space=smem, size = 0x4, offset = 0x4, fixed_abs, tag = 'smem constant byte address 0x4 - core index']
  #allocation1 [shape = 'u32[72,128]{1,0:T(1,128)}', space=vmem, size = 0x9000, scoped, tag = 'internal scratch']
  %s0 = inlined_call_operand.hbm [shape: f32[16,128], index: 0, kind: input, shape index: {}]
  %s1 = inlined_call_operand.hbm [shape: f32[16,128], index: 1, kind: input, shape index: {}]
  %s2 = inlined_call_operand.hbm [shape: f32[8,128], index: 2, kind: output, shape index: {}]
  %s3 = sld [smem:[#allocation0]]
  $region30: #{tpu_custom_call.1} parent=0
    _
  %s5 = ssub.s32 1, %s3
  %s6 = scalar_select 0, %s5, %s3
  $region1: #{tpu_custom_call.1} parent=0
    #allocation2 [shape = 'u8[8192]{0}', space=vmem, size = 0x2000, scoped, tag = 'input window, operand 0, single buffered']
    #allocation3 [shape = 's32[1]{0}', space=sflag, size = 0x4, scoped, tag = 'scoped memory for tpu_custom_call.1']
    #allocation4 [shape = 's32[1]{0}', space=sflag, size = 0x4, scoped, tag = 'scoped memory for tpu_custom_call.1']
    #allocation5 [shape = 'u8[8192]{0}', space=vmem, size = 0x2000, scoped, tag = 'input window, operand 1, single buffered']
    #allocation6 [shape = 's32[1]{0}', space=sflag, size = 0x4, scoped, tag = 'scoped memory for tpu_custom_call.1']
    #allocation7 [shape = 'u8[4096]{0}', space=vmem, size = 0x1000, scoped, tag = 'output window, operand 0, single buffered']
    %7 = vsyncpa [#allocation3], 0
    %8 = vsyncpa [#allocation6], 0
    %9 = vsyncpa [#allocation4], 0
    // Predicated region
    $region2: #{tpu_custom_call.1} parent=1 // pred_check
      _
    $region3: #{tpu_custom_call.1} parent=1 // pred_check_branch
      %11 = sbr.rel (0) target = $region5
    $region4: #{tpu_custom_call.1} parent=1 // pred_region
      %s12 = sadd.s32 0, 0
      %s13 = smul.u32 2, %s12
      %15 = vsyncadd [#allocation3], 0
      %s16 = smul.addr %s13, 8
      %s17 = scalar_lea.hbm %s0, %s16
      %s18 = sshll.u32 %s17, 4
      %s19 = int_to_ptr.hbm [resolvable:$true] %s18
      %s20 = sshll.u32 [#allocation2], 4
      %s21 = int_to_ptr.vmem [resolvable:$true] %s20
      %26 = dma.hbm_to_vmem [thread:$0]  %s19, 256, %s21, [#allocation3], 128, 128, 8
    $region5: #{tpu_custom_call.1} parent=1 // pred_fallthru
      _
    // Predicated region
    $region6: #{tpu_custom_call.1} parent=1 // pred_check
      _
    $region7: #{tpu_custom_call.1} parent=1 // pred_check_branch
      %28 = sbr.rel (0) target = $region9
    $region8: #{tpu_custom_call.1} parent=1 // pred_region
      %s29 = sadd.s32 0, 0
      %s30 = smul.u32 2, %s29
      %32 = vsyncadd [#allocation6], 0
      %s33 = smul.addr %s30, 8
      %s34 = scalar_lea.hbm %s1, %s33
      %s35 = sshll.u32 %s34, 4
      %s36 = int_to_ptr.hbm [resolvable:$true] %s35
      %s37 = sshll.u32 [#allocation5], 4
      %s38 = int_to_ptr.vmem [resolvable:$true] %s37
      %43 = dma.hbm_to_vmem [thread:$0]  %s36, 256, %s38, [#allocation6], 128, 128, 8
    $region9: #{tpu_custom_call.1} parent=1 // pred_fallthru
      _
    // Predicated region
    $region10: #{tpu_custom_call.1} parent=1 // pred_check
      _
    $region11: #{tpu_custom_call.1} parent=1 // pred_check_branch
      %45 = sbr.rel (0) target = $region13
    $region12: #{tpu_custom_call.1} parent=1 // pred_region
      %47 = dma.done [#allocation3], 256
    $region13: #{tpu_custom_call.1} parent=1 // pred_fallthru
      _
    // Predicated region
    $region14: #{tpu_custom_call.1} parent=1 // pred_check
      _
    $region15: #{tpu_custom_call.1} parent=1 // pred_check_branch
      %49 = sbr.rel (0) target = $region17
    $region16: #{tpu_custom_call.1} parent=1 // pred_region
      %51 = dma.done [#allocation6], 256
    $region17: #{tpu_custom_call.1} parent=1 // pred_fallthru
      _
    %s52 = sadd.s32 0, 0
    %s53 = smul.u32 2, %s52
    %s54 = sadd.s32 0, 0
    %s55 = smul.u32 2, %s54
    %p56 = scmp.eq.s32.totalorder 0, 0
    // Predicated region
    $region18: #{tpu_custom_call.1} parent=1 // pred_check
      %p57 = pneg %p56
    $region19: #{tpu_custom_call.1} parent=1 // pred_check_branch
      %59 = sbr.rel (%p57) target = $region21
    $region20: #{tpu_custom_call.1} parent=1 // pred_region
      %60 = vst [vmem:[#allocation7] sm:$0xff] 0.0
    $region21: #{tpu_custom_call.1} parent=1 // pred_fallthru
      _
    %v61 = vld [vmem:[#allocation2] sm:$0xff]
    %v62 = vld [vmem:[#allocation2 + $0x8] sm:$0xff]
    %v63 = vld [vmem:[#allocation5] sm:$0xff]
    %v64 = vld [vmem:[#allocation5 + $0x8] sm:$0xff]
    %v65 = vsub.f32 %v61, %v63
    %v66 = vsub.f32 %v62, %v64
    %v67 = vmul.f32 %v65, %v65
    %v68 = vmul.f32 %v66, %v66
    %v69 = vld [vmem:[#allocation7] sm:$0xff]
    %v70 = vadd.f32 %v67, %v68
    %v71 = vadd.f32 %v69, %v70
    %72 = vst [vmem:[#allocation7] sm:$0xff] %v71
    // Predicated region
    $region22: #{tpu_custom_call.1} parent=1 // pred_check
      _
    $region23: #{tpu_custom_call.1} parent=1 // pred_check_branch
      %74 = sbr.rel (0) target = $region25
    $region24: #{tpu_custom_call.1} parent=1 // pred_region
      %76 = vsyncadd [#allocation4], 0
      %s78 = sshll.u32 [#allocation7], 4
      %s79 = int_to_ptr.vmem [resolvable:$true] %s78
      %s80 = sshll.u32 %s2, 4
      %s81 = int_to_ptr.hbm [resolvable:$true] %s80
      %83 = dma.vmem_to_hbm [thread:$0]  %s79, 128, %s81, [#allocation4]
    $region25: #{tpu_custom_call.1} parent=1 // pred_fallthru
      _
    // Predicated region
    $region26: #{tpu_custom_call.1} parent=1 // pred_check
      _
    $region27: #{tpu_custom_call.1} parent=1 // pred_check_branch
      %85 = sbr.rel (0) target = $region29
    $region28: #{tpu_custom_call.1} parent=1 // pred_region
      %87 = dma.done [#allocation4], 128
    $region29: #{tpu_custom_call.1} parent=1 // pred_fallthru
      _
    %88 = vsyncpa [#allocation3], 1
    %89 = vsyncpa [#allocation6], 1
    %90 = vsyncpa [#allocation4], 1

</llo_original>
